<compile_context>
chip_gen: v6e
topology: v6e:2x2x1
jax: 0.10.0
libtpu: 0.0.40
codegen_flags: <defaults>
</compile_context>

<pallas_src>
import functools

import jax
import jax.numpy as jnp
from jax.experimental import pallas as pl
from jax.experimental.pallas import tpu as pltpu

# Physical constants of the PVTOL model (the module has no learned weights).
LENGTH = 0.25
MASS = 4.0
INERTIA = 0.0475
GRAVITY = 9.8
DIST = 0.25
DT = 0.05  # unused by forward(); kept only to mirror the PyTorch constructor

INV_MASS = 1.0 / MASS                # fold divide -> multiply
DIST_OVER_INERTIA = DIST / INERTIA   # fold divide -> multiply (<=1 ulp vs (*DIST)/INERTIA)

LANE = 128  # TPU lane width; the batch is padded (only) to this granularity.


def _pvtol_kernel(s_ref, u_ref, o_ref):
    """s_ref: (6, R, 128), u_ref: (2, R, 128), o_ref: (6, R, 128).

    Every operand below is a dense (R, 128) slab: full vregs, full-width
    unmasked vector stores, sin/cos at full EUP width.
    """
    theta = s_ref[2]
    x_d = s_ref[3]
    y_d = s_ref[4]
    theta_d = s_ref[5]
    u_1 = u_ref[0]
    u_2 = u_ref[1]

    sin_t = jnp.sin(theta)
    cos_t = jnp.cos(theta)

    o_ref[0] = x_d * cos_t - y_d * sin_t
    o_ref[1] = x_d * sin_t + y_d * cos_t
    o_ref[2] = theta_d
    o_ref[3] = y_d * theta_d - GRAVITY * sin_t
    o_ref[4] = -x_d * theta_d - GRAVITY * cos_t + (u_1 + u_2) * INV_MASS
    o_ref[5] = (u_1 - u_2) * DIST_OVER_INERTIA


def _round_up(x: int, m: int) -> int:
    return ((x + m - 1) // m) * m


def _pick_tile_rows(rows: int, tile_rows: int) -> int:
    """Rows (each 128 lanes wide) processed per grid step."""
    # Cap so the double-buffered footprint (~14.3 KiB per row, in+out) stays far
    # below v7x's 64 MiB per-TC VMEM; floor at the 8-sublane granularity.
    tile_rows = max(8, min(int(tile_rows), 1024))
    if rows <= 8:
        return rows  # single block equal to the full (small) array
    # Keep at least two grid steps when possible so v7x can shard the
    # "parallel" axis across both TensorCores.
    half = _round_up((rows + 1) // 2, 8)
    return max(8, min(tile_rows, half))


@functools.partial(jax.jit, static_argnames=("tile_rows",))
def pvtol_forward_packed(state_t, u_t, *, tile_rows: int = 512):
    """Lane-dense fast path (recommended API).

    state_t: (6, B) rows = [x, y, theta, x_d, y_d, theta_d], batch on lanes.
    u_t:     (2, B) rows = [u1, u2].
    returns  (6, B) = d/dt state in the same layout.

    When B is a multiple of 128 this performs no HBM-side relayout at all
    (the reshapes below are free row-major views).
    """
    assert state_t.shape[0] == 6 and u_t.shape[0] == 2
    B = state_t.shape[1]
    assert u_t.shape[1] == B
    dtype = state_t.dtype

    b_pad = _round_up(max(B, 1), LANE)
    if b_pad != B:
        # Pad only to the 128-lane granularity (never to the tile size).
        state_t = jnp.pad(state_t, ((0, 0), (0, b_pad - B)))
        u_t = jnp.pad(u_t, ((0, 0), (0, b_pad - B)))

    rows = b_pad // LANE
    r = _pick_tile_rows(rows, tile_rows)
    grid = (pl.cdiv(rows, r),)  # last block may be ragged -> masked edge block

    s3 = state_t.reshape(6, rows, LANE)  # free row-major reshape
    u3 = u_t.reshape(2, rows, LANE)      # free row-major reshape

    n_elem = rows * LANE
    out3 = pl.pallas_call(
        _pvtol_kernel,
        out_shape=jax.ShapeDtypeStruct((6, rows, LANE), dtype),
        grid=grid,
        in_specs=[
            pl.BlockSpec((6, r, LANE), lambda i: (0, i, 0)),
            pl.BlockSpec((2, r, LANE), lambda i: (0, i, 0)),
        ],
        out_specs=pl.BlockSpec((6, r, LANE), lambda i: (0, i, 0)),
        compiler_params=pltpu.CompilerParams(
            dimension_semantics=("parallel",),
            vmem_limit_bytes=32 * 1024 * 1024,  # headroom for tile_rows up to 1024 (v5e default is 16 MiB)
        ),
        cost_estimate=pl.CostEstimate(
            flops=17 * n_elem,
            transcendentals=2 * n_elem,
            bytes_accessed=56 * n_elem,
        ),
    )(s3, u3)

    out = out3.reshape(6, b_pad)
    return out if b_pad == B else out[:, :B]


def pvtol_forward_ref(state, u):
    """Pure-JAX reference in the PyTorch (B, 6)/(B, 2) layout (mirrors forward)."""
    theta = state[:, 2:3]
    x_d = state[:, 3:4]
    y_d = state[:, 4:5]
    theta_d = state[:, 5:6]
    u_1 = u[:, 0:1]
    u_2 = u[:, 1:2]
    sin_t, cos_t = jnp.sin(theta), jnp.cos(theta)
    return jnp.concatenate(
        [
            x_d * cos_t - y_d * sin_t,
            x_d * sin_t + y_d * cos_t,
            theta_d,
            y_d * theta_d - GRAVITY * sin_t,
            -x_d * theta_d - GRAVITY * cos_t + (u_1 + u_2) / MASS,
            (u_1 - u_2) * DIST / INERTIA,
        ],
        axis=-1,
    )


@functools.partial(jax.jit, static_argnames=("min_pallas_batch", "tile_rows"))
def pvtol_forward(state, u, *, min_pallas_batch: int = 1024, tile_rows: int = 512):
    """PyTorch-layout compatibility wrapper: state (B, 6), u (B, 2) -> (B, 6).

    Small batches: fused pure-JAX (kernel launch + layout churn would dominate).
    Large batches: one transpose each way + the packed Pallas kernel.
    Callers that care about HBM traffic should use `pvtol_forward_packed`
    with the (6, B)/(2, B) layout directly (no transposes at all).
    """
    B = state.shape[0]
    assert state.shape == (B, 6) and u.shape == (B, 2)
    if B < min_pallas_batch:
        return pvtol_forward_ref(state, u)
    return pvtol_forward_packed(state.T, u.T, tile_rows=tile_rows).T


if __name__ == "__main__":
    key = jax.random.PRNGKey(0)
    k1, k2, k3, k4 = jax.random.split(key, 4)

    # 1) Packed (lane-dense) Pallas path: B = 2048 -> 16 lane-rows, 2 grid steps.
    B = 2048
    state_t = jax.random.normal(k1, (6, B), dtype=jnp.float32)
    u_t = jax.random.normal(k2, (2, B), dtype=jnp.float32)
    out_t = jax.block_until_ready(pvtol_forward_packed(state_t, u_t))
    ref_t = pvtol_forward_ref(state_t.T, u_t.T).T
    assert out_t.shape == (6, B)
    assert jnp.allclose(out_t, ref_t, atol=1e-5, rtol=1e-5)

    # 2) Ragged batch (not a multiple of 128) through the packed Pallas kernel.
    B2 = 300
    state_t2 = jax.random.normal(k3, (6, B2), dtype=jnp.float32)
    u_t2 = jax.random.normal(k4, (2, B2), dtype=jnp.float32)
    out_t2 = jax.block_until_ready(pvtol_forward_packed(state_t2, u_t2))
    ref_t2 = pvtol_forward_ref(state_t2.T, u_t2.T).T
    assert out_t2.shape == (6, B2)
    assert jnp.allclose(out_t2, ref_t2, atol=1e-5, rtol=1e-5)

    # 3) PyTorch-layout wrapper, small batch (fused pure-JAX path).
    B3 = 8
    state3 = jax.random.normal(k1, (B3, 6), dtype=jnp.float32)
    u3 = jax.random.normal(k2, (B3, 2), dtype=jnp.float32)
    out3 = jax.block_until_ready(pvtol_forward(state3, u3))
    assert out3.shape == (B3, 6)
    assert jnp.allclose(out3, pvtol_forward_ref(state3, u3), atol=1e-5, rtol=1e-5)

    # 4) PyTorch-layout wrapper, batch above the threshold (transpose + packed kernel).
    state4 = state_t.T  # (2048, 6)
    u4 = u_t.T          # (2048, 2)
    out4 = jax.block_until_ready(pvtol_forward(state4, u4))
    assert out4.shape == (B, 6)
    assert jnp.allclose(out4, pvtol_forward_ref(state4, u4), atol=1e-5, rtol=1e-5)

    print("KERNEL_OK")
</pallas_src>

<mosaic_0001>
module attributes {stable_mosaic.version = 11 : i64} {
  func.func @_pvtol_kernel(%arg0: i32, %arg1: memref<6x8x128xf32, #tpu.memory_space<vmem>>, %arg2: memref<2x8x128xf32, #tpu.memory_space<vmem>>, %arg3: memref<6x8x128xf32, #tpu.memory_space<vmem>>) attributes {dimension_semantics = [#tpu.dimension_semantics<parallel>], iteration_bounds = array<i64: 2>, scalar_prefetch = 0 : i64, scratch_operands = 0 : i64, tpu.core_type = #tpu.core_type<tc>, window_params = [{transform_indices = @transform_0, window_bounds = array<i64: 6, 8, 128>}, {transform_indices = @transform_1, window_bounds = array<i64: 2, 8, 128>}, {transform_indices = @transform_2, window_bounds = array<i64: 6, 8, 128>}]} {
    %c2 = arith.constant 2 : index
    %c0 = arith.constant 0 : index
    %c0_0 = arith.constant 0 : index
    %0 = vector.load %arg1[%c2, %c0, %c0_0] : memref<6x8x128xf32, #tpu.memory_space<vmem>>, vector<1x8x128xf32>
    %1 = vector.shape_cast %0 : vector<1x8x128xf32> to vector<8x128xf32>
    %c3 = arith.constant 3 : index
    %c0_1 = arith.constant 0 : index
    %c0_2 = arith.constant 0 : index
    %2 = vector.load %arg1[%c3, %c0_1, %c0_2] : memref<6x8x128xf32, #tpu.memory_space<vmem>>, vector<1x8x128xf32>
    %3 = vector.shape_cast %2 : vector<1x8x128xf32> to vector<8x128xf32>
    %c4 = arith.constant 4 : index
    %c0_3 = arith.constant 0 : index
    %c0_4 = arith.constant 0 : index
    %4 = vector.load %arg1[%c4, %c0_3, %c0_4] : memref<6x8x128xf32, #tpu.memory_space<vmem>>, vector<1x8x128xf32>
    %5 = vector.shape_cast %4 : vector<1x8x128xf32> to vector<8x128xf32>
    %c5 = arith.constant 5 : index
    %c0_5 = arith.constant 0 : index
    %c0_6 = arith.constant 0 : index
    %6 = vector.load %arg1[%c5, %c0_5, %c0_6] : memref<6x8x128xf32, #tpu.memory_space<vmem>>, vector<1x8x128xf32>
    %7 = vector.shape_cast %6 : vector<1x8x128xf32> to vector<8x128xf32>
    %c0_7 = arith.constant 0 : index
    %c0_8 = arith.constant 0 : index
    %c0_9 = arith.constant 0 : index
    %8 = vector.load %arg2[%c0_7, %c0_8, %c0_9] : memref<2x8x128xf32, #tpu.memory_space<vmem>>, vector<1x8x128xf32>
    %9 = vector.shape_cast %8 : vector<1x8x128xf32> to vector<8x128xf32>
    %c1 = arith.constant 1 : index
    %c0_10 = arith.constant 0 : index
    %c0_11 = arith.constant 0 : index
    %10 = vector.load %arg2[%c1, %c0_10, %c0_11] : memref<2x8x128xf32, #tpu.memory_space<vmem>>, vector<1x8x128xf32>
    %11 = vector.shape_cast %10 : vector<1x8x128xf32> to vector<8x128xf32>
    %12 = math.sin %1 : vector<8x128xf32>
    %13 = math.cos %1 : vector<8x128xf32>
    %14 = arith.mulf %3, %13 : vector<8x128xf32>
    %15 = arith.mulf %5, %12 : vector<8x128xf32>
    %16 = arith.subf %14, %15 : vector<8x128xf32>
    %c0_12 = arith.constant 0 : index
    %c0_13 = arith.constant 0 : index
    %c0_14 = arith.constant 0 : index
    %17 = vector.load %arg3[%c0_12, %c0_13, %c0_14] : memref<6x8x128xf32, #tpu.memory_space<vmem>>, vector<1x8x128xf32>
    %18 = vector.shape_cast %17 : vector<1x8x128xf32> to vector<8x128xf32>
    %19 = vector.shape_cast %16 : vector<8x128xf32> to vector<1x8x128xf32>
    tpu.vector_store %arg3[%c0_12, %c0_13, %c0_14], %19 {strides = array<i32>} : memref<6x8x128xf32, #tpu.memory_space<vmem>>, vector<1x8x128xf32>,
    %20 = arith.mulf %3, %12 : vector<8x128xf32>
    %21 = arith.mulf %5, %13 : vector<8x128xf32>
    %22 = arith.addf %20, %21 : vector<8x128xf32>
    %c1_15 = arith.constant 1 : index
    %c0_16 = arith.constant 0 : index
    %c0_17 = arith.constant 0 : index
    %23 = vector.load %arg3[%c1_15, %c0_16, %c0_17] : memref<6x8x128xf32, #tpu.memory_space<vmem>>, vector<1x8x128xf32>
    %24 = vector.shape_cast %23 : vector<1x8x128xf32> to vector<8x128xf32>
    %25 = vector.shape_cast %22 : vector<8x128xf32> to vector<1x8x128xf32>
    tpu.vector_store %arg3[%c1_15, %c0_16, %c0_17], %25 {strides = array<i32>} : memref<6x8x128xf32, #tpu.memory_space<vmem>>, vector<1x8x128xf32>,
    %c2_18 = arith.constant 2 : index
    %c0_19 = arith.constant 0 : index
    %c0_20 = arith.constant 0 : index
    %26 = vector.load %arg3[%c2_18, %c0_19, %c0_20] : memref<6x8x128xf32, #tpu.memory_space<vmem>>, vector<1x8x128xf32>
    %27 = vector.shape_cast %26 : vector<1x8x128xf32> to vector<8x128xf32>
    %28 = vector.shape_cast %7 : vector<8x128xf32> to vector<1x8x128xf32>
    tpu.vector_store %arg3[%c2_18, %c0_19, %c0_20], %28 {strides = array<i32>} : memref<6x8x128xf32, #tpu.memory_space<vmem>>, vector<1x8x128xf32>,
    %29 = arith.mulf %5, %7 : vector<8x128xf32>
    %cst = arith.constant 9.800000e+00 : f32
    %30 = vector.broadcast %cst : f32 to vector<8x128xf32>
    %31 = arith.mulf %30, %12 : vector<8x128xf32>
    %32 = arith.subf %29, %31 : vector<8x128xf32>
    %c3_21 = arith.constant 3 : index
    %c0_22 = arith.constant 0 : index
    %c0_23 = arith.constant 0 : index
    %33 = vector.load %arg3[%c3_21, %c0_22, %c0_23] : memref<6x8x128xf32, #tpu.memory_space<vmem>>, vector<1x8x128xf32>
    %34 = vector.shape_cast %33 : vector<1x8x128xf32> to vector<8x128xf32>
    %35 = vector.shape_cast %32 : vector<8x128xf32> to vector<1x8x128xf32>
    tpu.vector_store %arg3[%c3_21, %c0_22, %c0_23], %35 {strides = array<i32>} : memref<6x8x128xf32, #tpu.memory_space<vmem>>, vector<1x8x128xf32>,
    %cst_24 = arith.constant 0.000000e+00 : f32
    %36 = vector.broadcast %cst_24 : f32 to vector<8x128xf32>
    %37 = arith.subf %36, %3 : vector<8x128xf32>
    %38 = arith.mulf %37, %7 : vector<8x128xf32>
    %cst_25 = arith.constant 9.800000e+00 : f32
    %39 = vector.broadcast %cst_25 : f32 to vector<8x128xf32>
    %40 = arith.mulf %39, %13 : vector<8x128xf32>
    %41 = arith.subf %38, %40 : vector<8x128xf32>
    %42 = arith.addf %9, %11 : vector<8x128xf32>
    %cst_26 = arith.constant 2.500000e-01 : f32
    %43 = vector.broadcast %cst_26 : f32 to vector<8x128xf32>
    %44 = arith.mulf %42, %43 : vector<8x128xf32>
    %45 = arith.addf %41, %44 : vector<8x128xf32>
    %c4_27 = arith.constant 4 : index
    %c0_28 = arith.constant 0 : index
    %c0_29 = arith.constant 0 : index
    %46 = vector.load %arg3[%c4_27, %c0_28, %c0_29] : memref<6x8x128xf32, #tpu.memory_space<vmem>>, vector<1x8x128xf32>
    %47 = vector.shape_cast %46 : vector<1x8x128xf32> to vector<8x128xf32>
    %48 = vector.shape_cast %45 : vector<8x128xf32> to vector<1x8x128xf32>
    tpu.vector_store %arg3[%c4_27, %c0_28, %c0_29], %48 {strides = array<i32>} : memref<6x8x128xf32, #tpu.memory_space<vmem>>, vector<1x8x128xf32>,
    %49 = arith.subf %9, %11 : vector<8x128xf32>
    %cst_30 = arith.constant 5.26315784 : f32
    %50 = vector.broadcast %cst_30 : f32 to vector<8x128xf32>
    %51 = arith.mulf %49, %50 : vector<8x128xf32>
    %c5_31 = arith.constant 5 : index
    %c0_32 = arith.constant 0 : index
    %c0_33 = arith.constant 0 : index
    %52 = vector.load %arg3[%c5_31, %c0_32, %c0_33] : memref<6x8x128xf32, #tpu.memory_space<vmem>>, vector<1x8x128xf32>
    %53 = vector.shape_cast %52 : vector<1x8x128xf32> to vector<8x128xf32>
    %54 = vector.shape_cast %51 : vector<8x128xf32> to vector<1x8x128xf32>
    tpu.vector_store %arg3[%c5_31, %c0_32, %c0_33], %54 {strides = array<i32>} : memref<6x8x128xf32, #tpu.memory_space<vmem>>, vector<1x8x128xf32>,
    return
  }
  func.func @transform_0(%arg0: i32) -> (i32, i32, i32) {
    %c0_i32 = arith.constant 0 : i32
    %c0_i32_0 = arith.constant 0 : i32
    %c0_i32_1 = arith.constant 0 : i32
    return %c0_i32, %arg0, %c0_i32_0 : i32, i32, i32
  }
  func.func @transform_1(%arg0: i32) -> (i32, i32, i32) {
    %c0_i32 = arith.constant 0 : i32
    %c0_i32_0 = arith.constant 0 : i32
    %c0_i32_1 = arith.constant 0 : i32
    return %c0_i32, %arg0, %c0_i32_0 : i32, i32, i32
  }
  func.func @transform_2(%arg0: i32) -> (i32, i32, i32) {
    %c0_i32 = arith.constant 0 : i32
    %c0_i32_0 = arith.constant 0 : i32
    %c0_i32_1 = arith.constant 0 : i32
    return %c0_i32, %arg0, %c0_i32_0 : i32, i32, i32
  }
}

</mosaic_0001>

<llo_original>
// kernel: pvtol_forward_packed.1
$region0: #{pvtol_forward_packed.1}
  #allocation0 [shape = 'u32[]', space=smem, size = 0x4, offset = 0x4, fixed_abs, tag = 'smem constant byte address 0x4 - core index']
  #allocation1 [shape = 'u32[144,128]{1,0:T(1,128)}', space=vmem, size = 0x12000, scoped, tag = 'internal scratch']
  %s0 = inlined_call_operand.vmem [shape: f32[6,16,128], index: 0, kind: input, shape index: {}]
  %s1 = inlined_call_operand.vmem [shape: f32[2,16,128], index: 1, kind: input, shape index: {}]
  %s2 = inlined_call_operand.vmem [shape: f32[6,16,128], index: 2, kind: output, shape index: {}]
  %s3 = sld [smem:[#allocation0]]
  $region151: #{pvtol_forward_packed.1} parent=0
    _
  %s5 = ssub.s32 1, %s3
  %s6 = scalar_select 0, %s5, %s3
  $region1: #{pvtol_forward_packed.1} parent=0
    #allocation2 [shape = 'u8[49152]{0}', space=vmem, size = 0xc000, scoped, tag = 'input window, operand 0']
    #allocation3 [shape = 'u8[16384]{0}', space=vmem, size = 0x4000, scoped, tag = 'input window, operand 1']
    #allocation4 [shape = 'u8[49152]{0}', space=vmem, size = 0xc000, scoped, tag = 'output window, operand 0']
    loop: start=0, step=1, limit=4
    $region2: #{pvtol_forward_packed.1} parent=1 // loop_pre_header
      _
    $region3: #{pvtol_forward_packed.1} parent=1 // loop_header
      %s8 = sphi 0, %s12
      %p9 = scmp.ge.s32.totalorder %s8, 4
      %s18 = sphi 0, %s20
      %s21 = sphi 0, %s18
      %s22 = sphi 0, %s21
      %s38 = sphi 0, %s22
      %s44 = sphi 0, %s46
      %s47 = sphi 0, %s44
      %s48 = sphi 0, %s47
      %s64 = sphi 0, %s48
      %s70 = sphi 0, %s72
      %s73 = sphi 0, %s70
      %s74 = sphi 0, %s73
      %s90 = sphi 0, %s74
    $region4: #{pvtol_forward_packed.1} parent=1 // loop_header_branch
      %11 = sbr.rel (%p9) target = $region8
    $region5: #{pvtol_forward_packed.1} parent=1 // loop_body
      %s13 = ssub.s32 %s8, 1
      %s14 = ssub.s32 %s8, 2
      %s15 = sadd.s32 %s8, 1
      %s16 = ssub.s32 %s8, %s15
      %p17 = scmp.eq.s32.totalorder %s16, 0
      %s19 = sadd.s32 %s18, 1
      %s20 = scalar_select %p17, %s18, %s19
      %p23 = pneg %p17
      %p24 = scmp.eq.s32.totalorder %s8, 1
      %p25 = por %p23, %p24
      %p26 = scmp.ne.s32.totalorder %s18, %s21
      %p27 = scmp.eq.s32.totalorder %s8, 0
      %p28 = por %p26, %p27
      %p29 = scmp.ne.s32.totalorder %s18, %s21
      %p30 = scmp.eq.s32.totalorder %s13, 1
      %p31 = por %p29, %p30
      %p32 = scmp.ne.s32.totalorder %s21, %s22
      %p33 = scmp.eq.s32.totalorder %s13, 0
      %p34 = por %p32, %p33
      %p35 = scmp.ne.s32.totalorder %s21, %s22
      %p36 = scmp.eq.s32.totalorder %s14, 1
      %p37 = por %p35, %p36
      %p39 = scmp.ne.s32.totalorder %s22, %s38
      %p40 = scmp.eq.s32.totalorder %s14, 0
      %p41 = por %p39, %p40
      %s42 = ssub.s32 %s8, %s15
      %p43 = scmp.eq.s32.totalorder %s42, 0
      %s45 = sadd.s32 %s44, 1
      %s46 = scalar_select %p43, %s44, %s45
      %p49 = pneg %p43
      %p50 = scmp.eq.s32.totalorder %s8, 1
      %p51 = por %p49, %p50
      %p52 = scmp.ne.s32.totalorder %s44, %s47
      %p53 = scmp.eq.s32.totalorder %s8, 0
      %p54 = por %p52, %p53
      %p55 = scmp.ne.s32.totalorder %s44, %s47
      %p56 = scmp.eq.s32.totalorder %s13, 1
      %p57 = por %p55, %p56
      %p58 = scmp.ne.s32.totalorder %s47, %s48
      %p59 = scmp.eq.s32.totalorder %s13, 0
      %p60 = por %p58, %p59
      %p61 = scmp.ne.s32.totalorder %s47, %s48
      %p62 = scmp.eq.s32.totalorder %s14, 1
      %p63 = por %p61, %p62
      %p65 = scmp.ne.s32.totalorder %s48, %s64
      %p66 = scmp.eq.s32.totalorder %s14, 0
      %p67 = por %p65, %p66
      %s68 = ssub.s32 %s8, %s15
      %p69 = scmp.eq.s32.totalorder %s68, 0
      %s71 = sadd.s32 %s70, 1
      %s72 = scalar_select %p69, %s70, %s71
      %p75 = pneg %p69
      %p76 = scmp.eq.s32.totalorder %s8, 1
      %p77 = por %p75, %p76
      %p78 = scmp.ne.s32.totalorder %s70, %s73
      %p79 = scmp.eq.s32.totalorder %s8, 0
      %p80 = por %p78, %p79
      %p81 = scmp.ne.s32.totalorder %s70, %s73
      %p82 = scmp.eq.s32.totalorder %s13, 1
      %p83 = por %p81, %p82
      %p84 = scmp.ne.s32.totalorder %s73, %s74
      %p85 = scmp.eq.s32.totalorder %s13, 0
      %p86 = por %p84, %p85
      %p87 = scmp.ne.s32.totalorder %s73, %s74
      %p88 = scmp.eq.s32.totalorder %s14, 1
      %p89 = por %p87, %p88
      %p91 = scmp.ne.s32.totalorder %s74, %s90
      %p92 = scmp.eq.s32.totalorder %s14, 0
      %p93 = por %p91, %p92
      %p94 = scmp.le.s32.totalorder 1, %s8
      %p95 = scmp.lt.s32.totalorder %s8, 3
      %p96 = pnand %p94, %p95
      %p97 = pneg %p96
      // Predicated region
      $region9: #{pvtol_forward_packed.1} parent=5 // pred_check
        _
      $region10: #{pvtol_forward_packed.1} parent=5 // pred_check_branch
        %99 = sbr.rel (%p96) target = $region12
      $region11: #{pvtol_forward_packed.1} parent=5 // pred_region
        %s100 = ssub.s32 %s8, 1
      $region12: #{pvtol_forward_packed.1} parent=5 // pred_fallthru
        _
      %p101 = scmp.lt.s32.totalorder %s8, 2
      // Predicated region
      $region13: #{pvtol_forward_packed.1} parent=5 // pred_check
        %p102 = pneg %p101
      $region14: #{pvtol_forward_packed.1} parent=5 // pred_check_branch
        %104 = sbr.rel (%p102) target = $region16
      $region15: #{pvtol_forward_packed.1} parent=5 // pred_region
        // Predicated region
        $region17: #{pvtol_forward_packed.1} parent=15 // pred_check
          %p105 = pneg %p28
        $region18: #{pvtol_forward_packed.1} parent=15 // pred_check_branch
          %107 = sbr.rel (%p105) target = $region20
        $region19: #{pvtol_forward_packed.1} parent=15 // pred_region
          %s108 = sand.u32 %s18, 1
          %s109 = sand.u32 %s18, 1
          %s110 = smul.addr %s109, 48
          %s111 = scalar_lea.vmem [#allocation2], %s110
          %s112 = smul.addr %s8, 8
          %s113 = scalar_lea.vmem %s0, %s112
          // Predicated region
          $region21: #{pvtol_forward_packed.1} parent=19 // pred_check
            _
          $region22: #{pvtol_forward_packed.1} parent=19 // pred_check_branch
            %115 = sbr.rel (0) target = $region24
          $region23: #{pvtol_forward_packed.1} parent=19 // pred_region
            // Predicated region
            $region25: #{pvtol_forward_packed.1} parent=23 // pred_check
              _
            $region26: #{pvtol_forward_packed.1} parent=23 // pred_check_branch
              %117 = sbr.rel (0) target = $region28
            $region27: #{pvtol_forward_packed.1} parent=23 // pred_region
              // Predicated region
              $region40: #{pvtol_forward_packed.1} parent=27 // pred_check
                _
              $region41: #{pvtol_forward_packed.1} parent=27 // pred_check_branch
                %143 = sbr.rel (0) target = $region43
              $region42: #{pvtol_forward_packed.1} parent=27 // pred_region
                loop: start=0, step=1, limit=1
                $region44: #{pvtol_forward_packed.1} parent=42 // loop_pre_header
                  _
                $region45: #{pvtol_forward_packed.1} parent=42 // loop_header
                  %s145 = sphi 0, %s149
                  %p146 = scmp.ge.s32.totalorder %s145, 1
                  %s150 = sphi %s113, %s113
                  %s151 = sphi %s111, %s111
                $region46: #{pvtol_forward_packed.1} parent=42 // loop_header_branch
                  %148 = sbr.rel (%p146) target = $region50
                $region47: #{pvtol_forward_packed.1} parent=42 // loop_body
                  %v152 = vld [vmem:[%s150] sm:$0xff]
                  %153 = vst [vmem:[%s151] sm:$0xff] %v152
                  %v154 = vld [vmem:[%s150 + $0x10] sm:$0xff]
                  %155 = vst [vmem:[%s151 + $0x8] sm:$0xff] %v154
                  %v156 = vld [vmem:[%s150 + $0x20] sm:$0xff]
                  %157 = vst [vmem:[%s151 + $0x10] sm:$0xff] %v156
                  %v158 = vld [vmem:[%s150 + $0x30] sm:$0xff]
                  %159 = vst [vmem:[%s151 + $0x18] sm:$0xff] %v158
                  %v160 = vld [vmem:[%s150 + $0x40] sm:$0xff]
                  %161 = vst [vmem:[%s151 + $0x20] sm:$0xff] %v160
                  %v162 = vld [vmem:[%s150 + $0x50] sm:$0xff]
                  %163 = vst [vmem:[%s151 + $0x28] sm:$0xff] %v162
                $region48: #{pvtol_forward_packed.1} parent=42 // loop_footer
                  %s149 = sadd.s32 1, %s145
                $region49: #{pvtol_forward_packed.1} parent=42 // loop_footer_branch
                  %144 = sbr.rel target = $region45
                $region50: #{pvtol_forward_packed.1} parent=42 // loop_exit
                  _
              $region43: #{pvtol_forward_packed.1} parent=27 // pred_fallthru
                _
              // Predicated region
              $region51: #{pvtol_forward_packed.1} parent=27 // pred_check
                _
              $region52: #{pvtol_forward_packed.1} parent=27 // pred_check_branch
                %165 = sbr.rel target = $region54
              $region53: #{pvtol_forward_packed.1} parent=27 // pred_region
                _
              $region54: #{pvtol_forward_packed.1} parent=27 // pred_fallthru
                _
            $region28: #{pvtol_forward_packed.1} parent=23 // pred_fallthru
              _
            // Predicated region
            $region29: #{pvtol_forward_packed.1} parent=23 // pred_check
              _
            $region30: #{pvtol_forward_packed.1} parent=23 // pred_check_branch
              %119 = sbr.rel target = $region32
            $region31: #{pvtol_forward_packed.1} parent=23 // pred_region
              %s121 = ssub.s32 256, 1
              loop: start=0, step=1, limit=1
              $region33: #{pvtol_forward_packed.1} parent=31 // loop_pre_header
                _
              $region34: #{pvtol_forward_packed.1} parent=31 // loop_header
                %s123 = sphi 0, %s127
                %p124 = scmp.ge.s32.totalorder %s123, 1
                %s128 = sphi %s113, %s113
                %s129 = sphi %s111, %s111
              $region35: #{pvtol_forward_packed.1} parent=31 // loop_header_branch
                %126 = sbr.rel (%p124) target = $region39
              $region36: #{pvtol_forward_packed.1} parent=31 // loop_body
                %v130 = vld [vmem:[%s128] sm:%s121]
                %131 = vst [vmem:[%s129] sm:%s121] %v130
                %v132 = vld [vmem:[%s128 + $0x10] sm:%s121]
                %133 = vst [vmem:[%s129 + $0x8] sm:%s121] %v132
                %v134 = vld [vmem:[%s128 + $0x20] sm:%s121]
                %135 = vst [vmem:[%s129 + $0x10] sm:%s121] %v134
                %v136 = vld [vmem:[%s128 + $0x30] sm:%s121]
                %137 = vst [vmem:[%s129 + $0x18] sm:%s121] %v136
                %v138 = vld [vmem:[%s128 + $0x40] sm:%s121]
                %139 = vst [vmem:[%s129 + $0x20] sm:%s121] %v138
                %v140 = vld [vmem:[%s128 + $0x50] sm:%s121]
                %141 = vst [vmem:[%s129 + $0x28] sm:%s121] %v140
              $region37: #{pvtol_forward_packed.1} parent=31 // loop_footer
                %s127 = sadd.s32 1, %s123
              $region38: #{pvtol_forward_packed.1} parent=31 // loop_footer_branch
                %122 = sbr.rel target = $region34
              $region39: #{pvtol_forward_packed.1} parent=31 // loop_exit
                _
            $region32: #{pvtol_forward_packed.1} parent=23 // pred_fallthru
              _
          $region24: #{pvtol_forward_packed.1} parent=19 // pred_fallthru
            _
          %166 = vnop
        $region20: #{pvtol_forward_packed.1} parent=15 // pred_fallthru
          _
        // Predicated region
        $region55: #{pvtol_forward_packed.1} parent=15 // pred_check
          %p167 = pneg %p54
        $region56: #{pvtol_forward_packed.1} parent=15 // pred_check_branch
          %169 = sbr.rel (%p167) target = $region58
        $region57: #{pvtol_forward_packed.1} parent=15 // pred_region
          %s170 = sand.u32 %s44, 1
          %s171 = sand.u32 %s44, 1
          %s172 = smul.addr %s171, 16
          %s173 = scalar_lea.vmem [#allocation3], %s172
          %s174 = smul.addr %s8, 8
          %s175 = scalar_lea.vmem %s1, %s174
          // Predicated region
          $region59: #{pvtol_forward_packed.1} parent=57 // pred_check
            _
          $region60: #{pvtol_forward_packed.1} parent=57 // pred_check_branch
            %177 = sbr.rel (0) target = $region62
          $region61: #{pvtol_forward_packed.1} parent=57 // pred_region
            // Predicated region
            $region63: #{pvtol_forward_packed.1} parent=61 // pred_check
              _
            $region64: #{pvtol_forward_packed.1} parent=61 // pred_check_branch
              %179 = sbr.rel (0) target = $region66
            $region65: #{pvtol_forward_packed.1} parent=61 // pred_region
              // Predicated region
              $region78: #{pvtol_forward_packed.1} parent=65 // pred_check
                _
              $region79: #{pvtol_forward_packed.1} parent=65 // pred_check_branch
                %197 = sbr.rel (0) target = $region81
              $region80: #{pvtol_forward_packed.1} parent=65 // pred_region
                loop: start=0, step=1, limit=1
                $region82: #{pvtol_forward_packed.1} parent=80 // loop_pre_header
                  _
                $region83: #{pvtol_forward_packed.1} parent=80 // loop_header
                  %s199 = sphi 0, %s203
                  %p200 = scmp.ge.s32.totalorder %s199, 1
                  %s204 = sphi %s175, %s175
                  %s205 = sphi %s173, %s173
                $region84: #{pvtol_forward_packed.1} parent=80 // loop_header_branch
                  %202 = sbr.rel (%p200) target = $region88
                $region85: #{pvtol_forward_packed.1} parent=80 // loop_body
                  %v206 = vld [vmem:[%s204] sm:$0xff]
                  %207 = vst [vmem:[%s205] sm:$0xff] %v206
                  %v208 = vld [vmem:[%s204 + $0x10] sm:$0xff]
                  %209 = vst [vmem:[%s205 + $0x8] sm:$0xff] %v208
                $region86: #{pvtol_forward_packed.1} parent=80 // loop_footer
                  %s203 = sadd.s32 1, %s199
                $region87: #{pvtol_forward_packed.1} parent=80 // loop_footer_branch
                  %198 = sbr.rel target = $region83
                $region88: #{pvtol_forward_packed.1} parent=80 // loop_exit
                  _
              $region81: #{pvtol_forward_packed.1} parent=65 // pred_fallthru
                _
              // Predicated region
              $region89: #{pvtol_forward_packed.1} parent=65 // pred_check
                _
              $region90: #{pvtol_forward_packed.1} parent=65 // pred_check_branch
                %211 = sbr.rel target = $region92
              $region91: #{pvtol_forward_packed.1} parent=65 // pred_region
                _
              $region92: #{pvtol_forward_packed.1} parent=65 // pred_fallthru
                _
            $region66: #{pvtol_forward_packed.1} parent=61 // pred_fallthru
              _
            // Predicated region
            $region67: #{pvtol_forward_packed.1} parent=61 // pred_check
              _
            $region68: #{pvtol_forward_packed.1} parent=61 // pred_check_branch
              %181 = sbr.rel target = $region70
            $region69: #{pvtol_forward_packed.1} parent=61 // pred_region
              %s183 = ssub.s32 256, 1
              loop: start=0, step=1, limit=1
              $region71: #{pvtol_forward_packed.1} parent=69 // loop_pre_header
                _
              $region72: #{pvtol_forward_packed.1} parent=69 // loop_header
                %s185 = sphi 0, %s189
                %p186 = scmp.ge.s32.totalorder %s185, 1
                %s190 = sphi %s175, %s175
                %s191 = sphi %s173, %s173
              $region73: #{pvtol_forward_packed.1} parent=69 // loop_header_branch
                %188 = sbr.rel (%p186) target = $region77
              $region74: #{pvtol_forward_packed.1} parent=69 // loop_body
                %v192 = vld [vmem:[%s190] sm:%s183]
                %193 = vst [vmem:[%s191] sm:%s183] %v192
                %v194 = vld [vmem:[%s190 + $0x10] sm:%s183]
                %195 = vst [vmem:[%s191 + $0x8] sm:%s183] %v194
              $region75: #{pvtol_forward_packed.1} parent=69 // loop_footer
                %s189 = sadd.s32 1, %s185
              $region76: #{pvtol_forward_packed.1} parent=69 // loop_footer_branch
                %184 = sbr.rel target = $region72
              $region77: #{pvtol_forward_packed.1} parent=69 // loop_exit
                _
            $region70: #{pvtol_forward_packed.1} parent=61 // pred_fallthru
              _
          $region62: #{pvtol_forward_packed.1} parent=57 // pred_fallthru
            _
          %212 = vnop
        $region58: #{pvtol_forward_packed.1} parent=15 // pred_fallthru
          _
      $region16: #{pvtol_forward_packed.1} parent=5 // pred_fallthru
        _
      %p213 = scmp.le.s32.totalorder 1, %s8
      %p214 = scmp.lt.s32.totalorder %s8, 3
      %p215 = pnand %p213, %p214
      %p216 = pneg %p215
      // Predicated region
      $region93: #{pvtol_forward_packed.1} parent=5 // pred_check
        _
      $region94: #{pvtol_forward_packed.1} parent=5 // pred_check_branch
        %218 = sbr.rel (%p215) target = $region96
      $region95: #{pvtol_forward_packed.1} parent=5 // pred_region
        %s219 = ssub.s32 %s8, 1
        %s220 = sand.u32 %s21, 1
        %s221 = sand.u32 %s21, 1
        %s222 = smul.addr %s221, 48
        %s223 = scalar_lea.vmem [#allocation2], %s222
        // Predicated region
        $region97: #{pvtol_forward_packed.1} parent=95 // pred_check
          %p224 = pneg %p34
        $region98: #{pvtol_forward_packed.1} parent=95 // pred_check_branch
          %226 = sbr.rel (%p224) target = $region100
        $region99: #{pvtol_forward_packed.1} parent=95 // pred_region
          _
        $region100: #{pvtol_forward_packed.1} parent=95 // pred_fallthru
          _
        %s227 = sand.u32 %s47, 1
        %s228 = sand.u32 %s47, 1
        %s229 = smul.addr %s228, 16
        %s230 = scalar_lea.vmem [#allocation3], %s229
        // Predicated region
        $region101: #{pvtol_forward_packed.1} parent=95 // pred_check
          %p231 = pneg %p60
        $region102: #{pvtol_forward_packed.1} parent=95 // pred_check_branch
          %233 = sbr.rel (%p231) target = $region104
        $region103: #{pvtol_forward_packed.1} parent=95 // pred_region
          _
        $region104: #{pvtol_forward_packed.1} parent=95 // pred_fallthru
          _
        %s234 = sand.u32 %s21, 1
        %s235 = sand.u32 %s21, 1
        %s236 = smul.addr %s235, 48
        %s237 = scalar_lea.vmem [#allocation2], %s236
        %p238 = pneg %p34
        %p239 = pneg %p31
        %s240 = sand.u32 %s47, 1
        %s241 = sand.u32 %s47, 1
        %s242 = smul.addr %s241, 16
        %s243 = scalar_lea.vmem [#allocation3], %s242
        %p244 = pneg %p60
        %p245 = pneg %p57
        %p246 = pneg %p86
        %p247 = pneg %p83
        %s248 = sand.u32 %s73, 1
        %s249 = sand.u32 %s73, 1
        %s250 = smul.addr %s249, 48
        %s251 = scalar_lea.vmem [#allocation4], %s250
        %s252 = scalar_lea.vmem %s223, 16 [#allocation2]
        %v253 = vld [vmem:[%s252] sm:$0xff]
        %s254 = scalar_lea.vmem %s223, 24 [#allocation2]
        %v255 = vld [vmem:[%s254] sm:$0xff]
        %s256 = scalar_lea.vmem %s223, 32 [#allocation2]
        %v257 = vld [vmem:[%s256] sm:$0xff]
        %s258 = scalar_lea.vmem %s223, 40 [#allocation2]
        %v259 = vld [vmem:[%s258] sm:$0xff]
        %v260 = vld [vmem:[%s230] sm:$0xff]
        %s261 = scalar_lea.vmem %s230, 8 [#allocation3]
        %v262 = vld [vmem:[%s261] sm:$0xff]
        %v263 = vand.u32 2147483647, %v253
        %vm264 = vcmp.le.f32.partialorder %v263, 0.7853982
        %vm265 = vcmp.lt.s32.totalorder %v253, 0
        %v266 = vand.u32 %v253, 2139095040
        %v267 = vshrl.u32 %v266, 23
        %v268 = vsub.s32 %v267, 127
        %v269 = vand.u32 2147483647, %v253
        %v270 = vand.u32 %v269, 8388607
        %v271 = vor.u32 %v270, 8388608
        %v272 = vsub.s32 0, %v271
        %v273 = vadd.s32 %v268, 1
        %vm274 = vcmp.gt.s32.totalorder %v273, 0
        %v275 = vsel %vm274, %v273, 0
        %v276 = vshrl.u32 %v275, 5
        %v277 = vand.u32 %v275, 31
        %v278 = vsub.s32 32, %v277
        %v279 = vshrl.u32 683565275, %v278
        %v280 = vshll.u32 683565275, %v277
        %v281 = vshrl.u32 2475754826, %v278
        %v282 = vor.u32 %v280, %v281
        %v283 = vshll.u32 2475754826, %v277
        %v284 = vshrl.u32 2131351028, %v278
        %v285 = vor.u32 %v283, %v284
        %v286 = vshll.u32 2131351028, %v277
        %v287 = vshrl.u32 2102212464, %v278
        %v288 = vor.u32 %v286, %v287
        %v289 = vshll.u32 2102212464, %v277
        %v290 = vshrl.u32 920167782, %v278
        %v291 = vor.u32 %v289, %v290
        %v292 = vshll.u32 920167782, %v277
        %v293 = vshrl.u32 1326507024, %v278
        %v294 = vor.u32 %v292, %v293
        %vm295 = vcmp.lt.s32.totalorder %v276, 1
        %vm296 = vcmp.lt.s32.totalorder %v276, 2
        %vm297 = vcmp.lt.s32.totalorder %v276, 3
        %vm298 = vcmp.lt.s32.totalorder %v276, 4
        %v299 = vsel %vm295, %v279, %v282
        %v300 = vsel %vm298, %v288, 2102212464
        %v301 = vsel %vm297, %v285, %v300
        %v302 = vsel %vm296, %v299, %v301
        %v303 = vsel %vm295, %v282, %v285
        %v304 = vsel %vm298, %v291, 920167782
        %v305 = vsel %vm297, %v288, %v304
        %v306 = vsel %vm296, %v303, %v305
        %v307 = vsel %vm295, %v285, %v288
        %v308 = vsel %vm298, %v294, 1326507024
        %v309 = vsel %vm297, %v291, %v308
        %v310 = vsel %vm296, %v307, %v309
        %v311 = vshll.u32 %v271, 8
        %v312 = vmul.u32.u64.compose %v311, %v310
        %v313 = vextract.low.u32 %v312
        %v314 = vextract.high.u32 %v312
        %v315 = vmul.u32.u64.compose %v311, %v306
        %v316 = vextract.low.u32 %v315
        %v317 = vextract.high.u32 %v315
        %v318 = vmul.u32 %v311, %v302
        %v319 = vadd.s32 %v314, %v316
        %vm320 = vc.u32 %v314, %v316
        %v321 = vadd.s32 %v317, 1
        %v322 = vsel %vm320, %v321, %v317
        %v323 = vadd.s32 %v318, %v322
        %v324 = vadd.s32 %v323, 536870912
        %v325 = vshrl.u32 %v324, 30
        %v326 = vshll.u32 %v325, 30
        %v327 = vsub.s32 %v323, %v326
        %vm328 = vcmp.lt.s32.totalorder %v327, 0
        %v329 = vsub.s32 0, %v327
        %v330 = vsel %vm328, %v329, %v327
        %v331 = vclz %v330
        %v332 = vsub.s32 %v331, 2
        %vm333 = vcmp.gt.s32.totalorder 0, %v332
        %v334 = vsel %vm333, 0, %v332
        %v335 = vsub.s32 32, %v334
        %v336 = vshll.u32 %v327, %v334
        %v337 = vshrl.u32 %v319, %v335
        %v338 = vor.u32 %v336, %v337
        %v339 = vsub.s32 4294967266, %v334
        %v340 = vadd.s32 %v339, 127
        %v341 = vshll.u32 %v340, 23
        %v342 = vor.u32 4788187, %v341
        %v343 = vand.u32 2147483647, %v342
        %v345 = vcvt.s32.f32 %v338
        %v346 = vmul.f32 %v345, %v343
        %v347 = vxor.u32 %v346, 2147483648
        %v348 = vsel %vm265, %v347, %v346
        %v349 = vsub.s32 4, %v325
        %v350 = vsel %vm265, %v349, %v325
        %v351 = vsel %vm264, %v253, %v348
        %v352 = vsel %vm264, 0, %v350
        %v353 = vcosq.f32.pop %v351
        %v354 = vsinq.f32.pop %v351
        %vm355 = vweird.f32 %v253
        %v356 = vadd.s32 %v352, 3
        %v357 = vand.u32 %v356, 3
        %vm358 = vcmp.lt.s32.totalorder %v357, 2
        %vm359 = vcmp.eq.s32.totalorder %v357, 0
        %v360 = vxor.u32 %v354, 2147483648
        %v361 = vsel %vm359, %v353, %v360
        %vm362 = vcmp.eq.s32.totalorder %v357, 2
        %v363 = vxor.u32 %v353, 2147483648
        %v364 = vsel %vm362, %v363, %v354
        %v365 = vsel %vm358, %v361, %v364
        %v366 = vsel %vm355, nan, %v365
        %v367 = vand.u32 2147483647, %v253
        %vm368 = vcmp.le.f32.partialorder %v367, 0.7853982
        %vm369 = vcmp.lt.s32.totalorder %v253, 0
        %v370 = vand.u32 %v253, 2139095040
        %v371 = vshrl.u32 %v370, 23
        %v372 = vsub.s32 %v371, 127
        %v373 = vand.u32 2147483647, %v253
        %v374 = vand.u32 %v373, 8388607
        %v375 = vor.u32 %v374, 8388608
        %v376 = vsub.s32 0, %v375
        %v377 = vadd.s32 %v372, 1
        %vm378 = vcmp.gt.s32.totalorder %v377, 0
        %v379 = vsel %vm378, %v377, 0
        %v380 = vshrl.u32 %v379, 5
        %v381 = vand.u32 %v379, 31
        %v382 = vsub.s32 32, %v381
        %v383 = vshrl.u32 683565275, %v382
        %v384 = vshll.u32 683565275, %v381
        %v385 = vshrl.u32 2475754826, %v382
        %v386 = vor.u32 %v384, %v385
        %v387 = vshll.u32 2475754826, %v381
        %v388 = vshrl.u32 2131351028, %v382
        %v389 = vor.u32 %v387, %v388
        %v390 = vshll.u32 2131351028, %v381
        %v391 = vshrl.u32 2102212464, %v382
        %v392 = vor.u32 %v390, %v391
        %v393 = vshll.u32 2102212464, %v381
        %v394 = vshrl.u32 920167782, %v382
        %v395 = vor.u32 %v393, %v394
        %v396 = vshll.u32 920167782, %v381
        %v397 = vshrl.u32 1326507024, %v382
        %v398 = vor.u32 %v396, %v397
        %vm399 = vcmp.lt.s32.totalorder %v380, 1
        %vm400 = vcmp.lt.s32.totalorder %v380, 2
        %vm401 = vcmp.lt.s32.totalorder %v380, 3
        %vm402 = vcmp.lt.s32.totalorder %v380, 4
        %v403 = vsel %vm399, %v383, %v386
        %v404 = vsel %vm402, %v392, 2102212464
        %v405 = vsel %vm401, %v389, %v404
        %v406 = vsel %vm400, %v403, %v405
        %v407 = vsel %vm399, %v386, %v389
        %v408 = vsel %vm402, %v395, 920167782
        %v409 = vsel %vm401, %v392, %v408
        %v410 = vsel %vm400, %v407, %v409
        %v411 = vsel %vm399, %v389, %v392
        %v412 = vsel %vm402, %v398, 1326507024
        %v413 = vsel %vm401, %v395, %v412
        %v414 = vsel %vm400, %v411, %v413
        %v415 = vshll.u32 %v375, 8
        %v416 = vmul.u32.u64.compose %v415, %v414
        %v417 = vextract.low.u32 %v416
        %v418 = vextract.high.u32 %v416
        %v419 = vmul.u32.u64.compose %v415, %v410
        %v420 = vextract.low.u32 %v419
        %v421 = vextract.high.u32 %v419
        %v422 = vmul.u32 %v415, %v406
        %v423 = vadd.s32 %v418, %v420
        %vm424 = vc.u32 %v418, %v420
        %v425 = vadd.s32 %v421, 1
        %v426 = vsel %vm424, %v425, %v421
        %v427 = vadd.s32 %v422, %v426
        %v428 = vadd.s32 %v427, 536870912
        %v429 = vshrl.u32 %v428, 30
        %v430 = vshll.u32 %v429, 30
        %v431 = vsub.s32 %v427, %v430
        %vm432 = vcmp.lt.s32.totalorder %v431, 0
        %v433 = vsub.s32 0, %v431
        %v434 = vsel %vm432, %v433, %v431
        %v435 = vclz %v434
        %v436 = vsub.s32 %v435, 2
        %vm437 = vcmp.gt.s32.totalorder 0, %v436
        %v438 = vsel %vm437, 0, %v436
        %v439 = vsub.s32 32, %v438
        %v440 = vshll.u32 %v431, %v438
        %v441 = vshrl.u32 %v423, %v439
        %v442 = vor.u32 %v440, %v441
        %v443 = vsub.s32 4294967266, %v438
        %v444 = vadd.s32 %v443, 127
        %v445 = vshll.u32 %v444, 23
        %v446 = vor.u32 4788187, %v445
        %v447 = vand.u32 2147483647, %v446
        %v449 = vcvt.s32.f32 %v442
        %v450 = vmul.f32 %v449, %v447
        %v451 = vxor.u32 %v450, 2147483648
        %v452 = vsel %vm369, %v451, %v450
        %v453 = vsub.s32 4, %v429
        %v454 = vsel %vm369, %v453, %v429
        %v455 = vsel %vm368, %v253, %v452
        %v456 = vsel %vm368, 0, %v454
        %v457 = vcosq.f32.pop %v455
        %v458 = vsinq.f32.pop %v455
        %vm459 = vweird.f32 %v253
        %v460 = vand.u32 %v456, 3
        %vm461 = vcmp.lt.s32.totalorder %v460, 2
        %vm462 = vcmp.eq.s32.totalorder %v460, 0
        %v463 = vxor.u32 %v458, 2147483648
        %v464 = vsel %vm462, %v457, %v463
        %vm465 = vcmp.eq.s32.totalorder %v460, 2
        %v466 = vxor.u32 %v457, 2147483648
        %v467 = vsel %vm465, %v466, %v458
        %v468 = vsel %vm461, %v464, %v467
        %v469 = vsel %vm459, nan, %v468
        %v470 = vmul.f32 %v255, %v469
        %v471 = vmul.f32 %v257, %v366
        %v472 = vsub.f32 %v470, %v471
        %473 = vst [vmem:[%s251] sm:$0xff] %v472
        %v474 = vmul.f32 %v255, %v366
        %v475 = vmul.f32 %v257, %v469
        %v476 = vadd.f32 %v474, %v475
        %s477 = scalar_lea.vmem %s251, 8 [#allocation4]
        %478 = vst [vmem:[%s477] sm:$0xff] %v476
        %s479 = scalar_lea.vmem %s251, 16 [#allocation4]
        %480 = vst [vmem:[%s479] sm:$0xff] %v259
        %v481 = vmul.f32 %v257, %v259
        %v482 = vmul.f32 %v366, 9.8
        %v483 = vsub.f32 %v481, %v482
        %s484 = scalar_lea.vmem %s251, 24 [#allocation4]
        %485 = vst [vmem:[%s484] sm:$0xff] %v483
        %v486 = vsub.f32 0.0, %v255
        %v487 = vmul.f32 %v486, %v259
        %v488 = vmul.f32 %v469, 9.8
        %v489 = vsub.f32 %v487, %v488
        %v490 = vadd.f32 %v260, %v262
        %v491 = vmul.f32 %v490, 0.25
        %v492 = vadd.f32 %v489, %v491
        %s493 = scalar_lea.vmem %s251, 32 [#allocation4]
        %494 = vst [vmem:[%s493] sm:$0xff] %v492
        %v495 = vsub.f32 %v260, %v262
        %v496 = vmul.f32 %v495, 5.263158
        %s497 = scalar_lea.vmem %s251, 40 [#allocation4]
        %498 = vst [vmem:[%s497] sm:$0xff] %v496
        %s499 = sand.u32 %s73, 1
        %s500 = sand.u32 %s73, 1
        %s501 = smul.addr %s500, 48
        %s502 = scalar_lea.vmem [#allocation4], %s501
        // Predicated region
        $region105: #{pvtol_forward_packed.1} parent=95 // pred_check
          %p503 = pneg %p83
        $region106: #{pvtol_forward_packed.1} parent=95 // pred_check_branch
          %505 = sbr.rel (%p503) target = $region108
        $region107: #{pvtol_forward_packed.1} parent=95 // pred_region
          %s506 = smul.addr %s13, 8
          %s507 = scalar_lea.vmem %s2, %s506
          // Predicated region
          $region109: #{pvtol_forward_packed.1} parent=107 // pred_check
            _
          $region110: #{pvtol_forward_packed.1} parent=107 // pred_check_branch
            %509 = sbr.rel (0) target = $region112
          $region111: #{pvtol_forward_packed.1} parent=107 // pred_region
            // Predicated region
            $region113: #{pvtol_forward_packed.1} parent=111 // pred_check
              _
            $region114: #{pvtol_forward_packed.1} parent=111 // pred_check_branch
              %511 = sbr.rel (0) target = $region116
            $region115: #{pvtol_forward_packed.1} parent=111 // pred_region
              // Predicated region
              $region128: #{pvtol_forward_packed.1} parent=115 // pred_check
                _
              $region129: #{pvtol_forward_packed.1} parent=115 // pred_check_branch
                %537 = sbr.rel (0) target = $region131
              $region130: #{pvtol_forward_packed.1} parent=115 // pred_region
                loop: start=0, step=1, limit=1
                $region132: #{pvtol_forward_packed.1} parent=130 // loop_pre_header
                  _
                $region133: #{pvtol_forward_packed.1} parent=130 // loop_header
                  %s539 = sphi 0, %s543
                  %p540 = scmp.ge.s32.totalorder %s539, 1
                  %s544 = sphi %s502, %s502
                  %s545 = sphi %s507, %s507
                $region134: #{pvtol_forward_packed.1} parent=130 // loop_header_branch
                  %542 = sbr.rel (%p540) target = $region138
                $region135: #{pvtol_forward_packed.1} parent=130 // loop_body
                  %v546 = vld [vmem:[%s544] sm:$0xff]
                  %547 = vst [vmem:[%s545] sm:$0xff] %v546
                  %v548 = vld [vmem:[%s544 + $0x8] sm:$0xff]
                  %549 = vst [vmem:[%s545 + $0x10] sm:$0xff] %v548
                  %v550 = vld [vmem:[%s544 + $0x10] sm:$0xff]
                  %551 = vst [vmem:[%s545 + $0x20] sm:$0xff] %v550
                  %v552 = vld [vmem:[%s544 + $0x18] sm:$0xff]
                  %553 = vst [vmem:[%s545 + $0x30] sm:$0xff] %v552
                  %v554 = vld [vmem:[%s544 + $0x20] sm:$0xff]
                  %555 = vst [vmem:[%s545 + $0x40] sm:$0xff] %v554
                  %v556 = vld [vmem:[%s544 + $0x28] sm:$0xff]
                  %557 = vst [vmem:[%s545 + $0x50] sm:$0xff] %v556
                $region136: #{pvtol_forward_packed.1} parent=130 // loop_footer
                  %s543 = sadd.s32 1, %s539
                $region137: #{pvtol_forward_packed.1} parent=130 // loop_footer_branch
                  %538 = sbr.rel target = $region133
                $region138: #{pvtol_forward_packed.1} parent=130 // loop_exit
                  _
              $region131: #{pvtol_forward_packed.1} parent=115 // pred_fallthru
                _
              // Predicated region
              $region139: #{pvtol_forward_packed.1} parent=115 // pred_check
                _
              $region140: #{pvtol_forward_packed.1} parent=115 // pred_check_branch
                %559 = sbr.rel target = $region142
              $region141: #{pvtol_forward_packed.1} parent=115 // pred_region
                _
              $region142: #{pvtol_forward_packed.1} parent=115 // pred_fallthru
                _
            $region116: #{pvtol_forward_packed.1} parent=111 // pred_fallthru
              _
            // Predicated region
            $region117: #{pvtol_forward_packed.1} parent=111 // pred_check
              _
            $region118: #{pvtol_forward_packed.1} parent=111 // pred_check_branch
              %513 = sbr.rel target = $region120
            $region119: #{pvtol_forward_packed.1} parent=111 // pred_region
              %s515 = ssub.s32 256, 1
              loop: start=0, step=1, limit=1
              $region121: #{pvtol_forward_packed.1} parent=119 // loop_pre_header
                _
              $region122: #{pvtol_forward_packed.1} parent=119 // loop_header
                %s517 = sphi 0, %s521
                %p518 = scmp.ge.s32.totalorder %s517, 1
                %s522 = sphi %s502, %s502
                %s523 = sphi %s507, %s507
              $region123: #{pvtol_forward_packed.1} parent=119 // loop_header_branch
                %520 = sbr.rel (%p518) target = $region127
              $region124: #{pvtol_forward_packed.1} parent=119 // loop_body
                %v524 = vld [vmem:[%s522] sm:%s515]
                %525 = vst [vmem:[%s523] sm:%s515] %v524
                %v526 = vld [vmem:[%s522 + $0x8] sm:%s515]
                %527 = vst [vmem:[%s523 + $0x10] sm:%s515] %v526
                %v528 = vld [vmem:[%s522 + $0x10] sm:%s515]
                %529 = vst [vmem:[%s523 + $0x20] sm:%s515] %v528
                %v530 = vld [vmem:[%s522 + $0x18] sm:%s515]
                %531 = vst [vmem:[%s523 + $0x30] sm:%s515] %v530
                %v532 = vld [vmem:[%s522 + $0x20] sm:%s515]
                %533 = vst [vmem:[%s523 + $0x40] sm:%s515] %v532
                %v534 = vld [vmem:[%s522 + $0x28] sm:%s515]
                %535 = vst [vmem:[%s523 + $0x50] sm:%s515] %v534
              $region125: #{pvtol_forward_packed.1} parent=119 // loop_footer
                %s521 = sadd.s32 1, %s517
              $region126: #{pvtol_forward_packed.1} parent=119 // loop_footer_branch
                %516 = sbr.rel target = $region122
              $region127: #{pvtol_forward_packed.1} parent=119 // loop_exit
                _
            $region120: #{pvtol_forward_packed.1} parent=111 // pred_fallthru
              _
          $region112: #{pvtol_forward_packed.1} parent=107 // pred_fallthru
            _
          %560 = vnop
        $region108: #{pvtol_forward_packed.1} parent=95 // pred_fallthru
          _
      $region96: #{pvtol_forward_packed.1} parent=5 // pred_fallthru
        _
      %p561 = scmp.le.s32.totalorder 2, %s8
      // Predicated region
      $region143: #{pvtol_forward_packed.1} parent=5 // pred_check
        %p562 = pneg %p561
      $region144: #{pvtol_forward_packed.1} parent=5 // pred_check_branch
        %564 = sbr.rel (%p562) target = $region146
      $region145: #{pvtol_forward_packed.1} parent=5 // pred_region
        %s565 = ssub.s32 %s8, 2
        // Predicated region
        $region147: #{pvtol_forward_packed.1} parent=145 // pred_check
          %p566 = pneg %p89
        $region148: #{pvtol_forward_packed.1} parent=145 // pred_check_branch
          %568 = sbr.rel (%p566) target = $region150
        $region149: #{pvtol_forward_packed.1} parent=145 // pred_region
          %s569 = sand.u32 %s74, 1
          %s570 = sand.u32 %s74, 1
          %s571 = smul.addr %s570, 48
          %s572 = scalar_lea.vmem [#allocation4], %s571
        $region150: #{pvtol_forward_packed.1} parent=145 // pred_fallthru
          _
      $region146: #{pvtol_forward_packed.1} parent=5 // pred_fallthru
        _
    $region6: #{pvtol_forward_packed.1} parent=1 // loop_footer
      %s12 = sadd.s32 1, %s8
    $region7: #{pvtol_forward_packed.1} parent=1 // loop_footer_branch
      %7 = sbr.rel target = $region3
    $region8: #{pvtol_forward_packed.1} parent=1 // loop_exit
      _

</llo_original>
